<compile_context>
chip_gen: v7x
topology: tpu7x:2x2x1
jax: 0.10.0
libtpu: 0.0.40
codegen_flags: <defaults>
</compile_context>

<pallas_src>
import jax
import jax.numpy as jnp
from jax.experimental import pallas as pl
from jax.experimental.pallas import tpu as pltpu


def _round_up(x: int, k: int) -> int:
    return ((x + k - 1) // k) * k


def _choose_tk(d_pad: int, itemsize: int, budget_bytes: int) -> int:
    """Pick the weight K-slab width (columns of W^T resident at a time)."""
    # Whole weight fits single-buffered -> no K tiling.
    if d_pad * d_pad * itemsize <= budget_bytes:
        return d_pad
    # Otherwise prefer 512/256-wide slabs (256-aligned for the v6e/v7x MXU),
    # fall back to 128 (d_pad is always a multiple of 128). Double-buffered.
    for tk in (512, 256, 128):
        if d_pad % tk == 0 and 2 * d_pad * tk * itemsize <= budget_bytes:
            return tk
    return 128


def bilinear_kernel(wT_ref, b_ref, t0_ref, t1t_ref, o_ref, proj_ref, acc_ref):
    # wT_ref:   (d_pad, tk)    -- k-th column slab of W^T (= [in, out])
    # b_ref:    (1, tk)        -- k-th slab of the bias, f32
    # t0_ref:   (1, tn, d_pad) -- one n-tile of one batch element
    # t1t_ref:  (1, tk, tm)    -- (k, j) tile of t1[b]^T
    # o_ref:    (1, tn, tm)
    # proj_ref: (nk, tn, tk)   -- cached projection t0 @ W^T + b (act dtype)
    # acc_ref:  (tn, tm)       -- f32 accumulator over the k axis
    j = pl.program_id(2)
    k = pl.program_id(3)
    nk = pl.num_programs(3)

    # Hoisted projection: compute the k-th slab of (t0 @ W^T + b) only on the
    # first m-tile of each (batch, n-tile); all other j re-use it from VMEM.
    # Bias add + dtype cast happen here, so the inner loop is a single matmul.
    @pl.when(j == 0)
    def _():
        p = jnp.dot(t0_ref[0], wT_ref[...], preferred_element_type=jnp.float32)
        p = p + b_ref[...]
        proj_ref[k] = p.astype(proj_ref.dtype)

    @pl.when(k == 0)
    def _():
        acc_ref[...] = jnp.zeros_like(acc_ref)

    acc_ref[...] += jnp.dot(
        proj_ref[k], t1t_ref[0], preferred_element_type=jnp.float32
    )

    @pl.when(k == nk - 1)
    def _():
        o_ref[0] = acc_ref[...].astype(o_ref.dtype)


def bilinear(t0, t1, weight, bias, *, tn_max=256, tm_max=256,
             weight_budget_bytes=12 << 20):
    """t0: [B, n, d], t1: [B, m, d], weight: [d, d] (out,in), bias: [d].

    Returns [B, n, m] with dtype matching t0.
    """
    B, n, d = t0.shape
    B1, m, d1 = t1.shape
    assert B1 == B and d1 == d and weight.shape == (d, d) and bias.shape == (d,)

    act_dtype = t0.dtype
    out_dtype = act_dtype
    itemsize = jnp.dtype(act_dtype).itemsize

    # Tile sizes: dtype-native sublane tile for n, lane-aligned m tile, d padded
    # to a multiple of 128 (lane / MXU contraction dimension).
    sub = {4: 8, 2: 16, 1: 32}.get(itemsize, 8)
    tn = min(_round_up(n, sub), tn_max)
    tm = min(_round_up(m, 128), tm_max)
    d_pad = _round_up(d, 128)
    n_pad = _round_up(n, tn)
    m_pad = _round_up(m, tm)

    tk = _choose_tk(d_pad, itemsize, weight_budget_bytes)
    nk = d_pad // tk

    # --- Wrapper-side layout plumbing (one-time, handled by XLA) ------------
    t1 = t1.astype(act_dtype)
    if n_pad != n or d_pad != d:
        t0 = jnp.pad(t0, ((0, 0), (0, n_pad - n), (0, d_pad - d)))
    t1t = jnp.swapaxes(t1, 1, 2)                                  # [B, d, m]
    if d_pad != d or m_pad != m:
        t1t = jnp.pad(t1t, ((0, 0), (0, d_pad - d), (0, m_pad - m)))

    wT = weight.T.astype(act_dtype)                               # [in, out]
    if d_pad != d:
        wT = jnp.pad(wT, ((0, d_pad - d), (0, d_pad - d)))
    bias_f32 = bias.astype(jnp.float32)
    if d_pad != d:
        bias_f32 = jnp.pad(bias_f32, (0, d_pad - d))
    bias2d = bias_f32.reshape(1, d_pad)

    # --- Specs ---------------------------------------------------------------
    grid = (B, n_pad // tn, m_pad // tm, nk)

    if nk == 1:
        # Grid-invariant blocks: single-buffer to save VMEM.
        w_spec = pl.BlockSpec((d_pad, tk), lambda b, i, j, k: (0, k),
                              pipeline_mode=pl.Buffered(1))
        b_spec = pl.BlockSpec((1, tk), lambda b, i, j, k: (0, k),
                              pipeline_mode=pl.Buffered(1))
        w_bufs = 1
    else:
        w_spec = pl.BlockSpec((d_pad, tk), lambda b, i, j, k: (0, k))
        b_spec = pl.BlockSpec((1, tk), lambda b, i, j, k: (0, k))
        w_bufs = 2

    # Explicit VMEM budget computed from the actual buffers (+ headroom).
    vmem_bytes = (
        w_bufs * d_pad * tk * itemsize            # W^T slab(s)
        + w_bufs * 8 * 128 * 4                    # bias slab(s), padded tile
        + 2 * tn * d_pad * itemsize               # t0 tile (double-buffered)
        + 2 * tk * tm * itemsize                  # t1^T tile
        + 2 * tn * tm * jnp.dtype(out_dtype).itemsize  # output tile
        + nk * tn * tk * itemsize                 # cached projection
        + tn * tm * 4                             # f32 accumulator
    )
    vmem_limit = int(min(max(int(vmem_bytes * 1.3) + (2 << 20), 32 << 20),
                         64 << 20))

    out = pl.pallas_call(
        bilinear_kernel,
        out_shape=jax.ShapeDtypeStruct((B, n_pad, m_pad), out_dtype),
        grid_spec=pltpu.PrefetchScalarGridSpec(
            num_scalar_prefetch=0,
            grid=grid,
            in_specs=[
                w_spec,                                                  # W^T
                b_spec,                                                  # bias
                pl.BlockSpec((1, tn, d_pad), lambda b, i, j, k: (b, i, 0)),
                pl.BlockSpec((1, tk, tm), lambda b, i, j, k: (b, k, j)),
            ],
            out_specs=pl.BlockSpec((1, tn, tm), lambda b, i, j, k: (b, i, j)),
            scratch_shapes=[
                pltpu.VMEM((nk, tn, tk), act_dtype),   # cached projection
                pltpu.VMEM((tn, tm), jnp.float32),     # k-accumulator
            ],
        ),
        compiler_params=pltpu.CompilerParams(
            dimension_semantics=("parallel", "parallel", "arbitrary",
                                 "arbitrary"),
            vmem_limit_bytes=vmem_limit,
        ),
    )(wT, bias2d, t0, t1t)

    return out[:, :n, :m]


if __name__ == "__main__":
    B, n, m, d = 2, 8, 8, 32

    key = jax.random.PRNGKey(0)
    k_w, k_b, k_t0, k_t1 = jax.random.split(key, 4)

    # Deterministic synthetic parameters for nn.Linear(d, d)
    # (uniform init roughly matching PyTorch's default bound 1/sqrt(d)).
    bound = 1.0 / (d ** 0.5)
    weight = jax.random.uniform(k_w, (d, d), jnp.float32, -bound, bound)
    bias = jax.random.uniform(k_b, (d,), jnp.float32, -bound, bound)

    t0 = jax.random.normal(k_t0, (B, n, d), jnp.float32)
    t1 = jax.random.normal(k_t1, (B, m, d), jnp.float32)

    out = bilinear(t0, t1, weight, bias)
    out = jax.block_until_ready(out)

    # Reference check in plain JAX.
    ref = jnp.einsum("bnd,bmd->bnm", t0 @ weight.T + bias, t1)
    assert out.shape == (B, n, m)
    assert jnp.allclose(out, ref, atol=1e-3, rtol=1e-3)

    print("KERNEL_OK")
</pallas_src>

<mosaic_0001>
module attributes {stable_mosaic.version = 11 : i64} {
  func.func @bilinear_kernel(%arg0: i32, %arg1: i32, %arg2: i32, %arg3: i32, %arg4: memref<128x128xf32, #tpu.memory_space<vmem>>, %arg5: memref<1x128xf32, #tpu.memory_space<vmem>>, %arg6: memref<1x8x128xf32, #tpu.memory_space<vmem>>, %arg7: memref<1x128x128xf32, #tpu.memory_space<vmem>>, %arg8: memref<1x8x128xf32, #tpu.memory_space<vmem>>, %arg9: memref<1x8x128xf32, #tpu.memory_space<vmem>>, %arg10: memref<8x128xf32, #tpu.memory_space<vmem>>) attributes {dimension_semantics = [#tpu.dimension_semantics<parallel>, #tpu.dimension_semantics<parallel>, #tpu.dimension_semantics<arbitrary>, #tpu.dimension_semantics<arbitrary>], iteration_bounds = array<i64: 2, 1, 1, 1>, scalar_prefetch = 0 : i64, scratch_operands = 2 : i64, tpu.core_type = #tpu.core_type<tc>, window_params = [{pipeline_mode = #tpu.pipeline_mode<synchronous>, transform_indices = @transform_0, window_bounds = array<i64: 128, 128>}, {pipeline_mode = #tpu.pipeline_mode<synchronous>, transform_indices = @transform_1, window_bounds = array<i64: 1, 128>}, {transform_indices = @transform_2, window_bounds = array<i64: 1, 8, 128>}, {transform_indices = @transform_3, window_bounds = array<i64: 1, 128, 128>}, {transform_indices = @transform_4, window_bounds = array<i64: 1, 8, 128>}]} {
    %c0_i32 = arith.constant 0 : i32
    %0 = arith.cmpi eq, %arg2, %c0_i32 : i32
    %1 = arith.extui %0 : i1 to i32
    %c0_i32_0 = arith.constant 0 : i32
    %2 = arith.cmpi ne, %1, %c0_i32_0 : i32
    scf.if %2 {
      %c0_13 = arith.constant 0 : index
      %c0_14 = arith.constant 0 : index
      %c0_15 = arith.constant 0 : index
      %18 = vector.load %arg6[%c0_13, %c0_14, %c0_15] : memref<1x8x128xf32, #tpu.memory_space<vmem>>, vector<1x8x128xf32>
      %19 = vector.shape_cast %18 : vector<1x8x128xf32> to vector<8x128xf32>
      %c0_16 = arith.constant 0 : index
      %c0_17 = arith.constant 0 : index
      %20 = vector.load %arg4[%c0_16, %c0_17] : memref<128x128xf32, #tpu.memory_space<vmem>>, vector<128x128xf32>
      %cst_18 = arith.constant dense<0.000000e+00> : vector<8x128xf32>
      %21 = tpu.matmul %19, %20, %cst_18 {dimension_numbers = #tpu.dot_dimension_numbers<[1], [0], [0], [1], [0, 0, 1, 1], [], []>} : vector<8x128xf32>, vector<128x128xf32>, vector<8x128xf32> -> vector<8x128xf32>
      %c0_19 = arith.constant 0 : index
      %c0_20 = arith.constant 0 : index
      %22 = vector.load %arg5[%c0_19, %c0_20] : memref<1x128xf32, #tpu.memory_space<vmem>>, vector<1x128xf32>
      %23 = vector.broadcast %22 : vector<1x128xf32> to vector<8x128xf32>
      %24 = arith.addf %21, %23 : vector<8x128xf32>
      %25 = arith.index_cast %arg3 : i32 to index
      %c0_21 = arith.constant 0 : index
      %c0_22 = arith.constant 0 : index
      %26 = vector.load %arg9[%25, %c0_21, %c0_22] : memref<1x8x128xf32, #tpu.memory_space<vmem>>, vector<1x8x128xf32>
      %27 = vector.shape_cast %26 : vector<1x8x128xf32> to vector<8x128xf32>
      %28 = vector.shape_cast %24 : vector<8x128xf32> to vector<1x8x128xf32>
      tpu.vector_store %arg9[%25, %c0_21, %c0_22], %28 {strides = array<i32>} : memref<1x8x128xf32, #tpu.memory_space<vmem>>, vector<1x8x128xf32>,
    } else {
    }
    %c0_i32_1 = arith.constant 0 : i32
    %3 = arith.cmpi eq, %arg3, %c0_i32_1 : i32
    %4 = arith.extui %3 : i1 to i32
    %c0_i32_2 = arith.constant 0 : i32
    %5 = arith.cmpi ne, %4, %c0_i32_2 : i32
    scf.if %5 {
      %cst_13 = arith.constant 0.000000e+00 : f32
      %18 = vector.broadcast %cst_13 : f32 to vector<8x128xf32>
      %c0_14 = arith.constant 0 : index
      %c0_15 = arith.constant 0 : index
      %19 = vector.load %arg10[%c0_14, %c0_15] : memref<8x128xf32, #tpu.memory_space<vmem>>, vector<8x128xf32>
      tpu.vector_store %arg10[%c0_14, %c0_15], %18 {strides = array<i32>} : memref<8x128xf32, #tpu.memory_space<vmem>>, vector<8x128xf32>,
    } else {
    }
    %c0 = arith.constant 0 : index
    %c0_3 = arith.constant 0 : index
    %6 = vector.load %arg10[%c0, %c0_3] : memref<8x128xf32, #tpu.memory_space<vmem>>, vector<8x128xf32>
    %7 = arith.index_cast %arg3 : i32 to index
    %c0_4 = arith.constant 0 : index
    %c0_5 = arith.constant 0 : index
    %8 = vector.load %arg9[%7, %c0_4, %c0_5] : memref<1x8x128xf32, #tpu.memory_space<vmem>>, vector<1x8x128xf32>
    %9 = vector.shape_cast %8 : vector<1x8x128xf32> to vector<8x128xf32>
    %c0_6 = arith.constant 0 : index
    %c0_7 = arith.constant 0 : index
    %c0_8 = arith.constant 0 : index
    %10 = vector.load %arg7[%c0_6, %c0_7, %c0_8] : memref<1x128x128xf32, #tpu.memory_space<vmem>>, vector<1x128x128xf32>
    %11 = vector.shape_cast %10 : vector<1x128x128xf32> to vector<128x128xf32>
    %cst = arith.constant dense<0.000000e+00> : vector<8x128xf32>
    %12 = tpu.matmul %9, %11, %cst {dimension_numbers = #tpu.dot_dimension_numbers<[1], [0], [0], [1], [0, 0, 1, 1], [], []>} : vector<8x128xf32>, vector<128x128xf32>, vector<8x128xf32> -> vector<8x128xf32>
    %13 = arith.addf %6, %12 : vector<8x128xf32>
    %c0_9 = arith.constant 0 : index
    %c0_10 = arith.constant 0 : index
    %14 = vector.load %arg10[%c0_9, %c0_10] : memref<8x128xf32, #tpu.memory_space<vmem>>, vector<8x128xf32>
    tpu.vector_store %arg10[%c0_9, %c0_10], %13 {strides = array<i32>} : memref<8x128xf32, #tpu.memory_space<vmem>>, vector<8x128xf32>,
    %c0_i32_11 = arith.constant 0 : i32
    %15 = arith.cmpi eq, %arg3, %c0_i32_11 : i32
    %16 = arith.extui %15 : i1 to i32
    %c0_i32_12 = arith.constant 0 : i32
    %17 = arith.cmpi ne, %16, %c0_i32_12 : i32
    scf.if %17 {
      %c0_13 = arith.constant 0 : index
      %c0_14 = arith.constant 0 : index
      %18 = vector.load %arg10[%c0_13, %c0_14] : memref<8x128xf32, #tpu.memory_space<vmem>>, vector<8x128xf32>
      %c0_15 = arith.constant 0 : index
      %c0_16 = arith.constant 0 : index
      %c0_17 = arith.constant 0 : index
      %19 = vector.load %arg8[%c0_15, %c0_16, %c0_17] : memref<1x8x128xf32, #tpu.memory_space<vmem>>, vector<1x8x128xf32>
      %20 = vector.shape_cast %19 : vector<1x8x128xf32> to vector<8x128xf32>
      %21 = vector.shape_cast %18 : vector<8x128xf32> to vector<1x8x128xf32>
      tpu.vector_store %arg8[%c0_15, %c0_16, %c0_17], %21 {strides = array<i32>} : memref<1x8x128xf32, #tpu.memory_space<vmem>>, vector<1x8x128xf32>,
    } else {
    }
    return
  }
  func.func @transform_0(%arg0: i32, %arg1: i32, %arg2: i32, %arg3: i32) -> (i32, i32) {
    %c0_i32 = arith.constant 0 : i32
    %c0_i32_0 = arith.constant 0 : i32
    return %c0_i32, %arg3 : i32, i32
  }
  func.func @transform_1(%arg0: i32, %arg1: i32, %arg2: i32, %arg3: i32) -> (i32, i32) {
    %c0_i32 = arith.constant 0 : i32
    %c0_i32_0 = arith.constant 0 : i32
    return %c0_i32, %arg3 : i32, i32
  }
  func.func @transform_2(%arg0: i32, %arg1: i32, %arg2: i32, %arg3: i32) -> (i32, i32, i32) {
    %c0_i32 = arith.constant 0 : i32
    %c0_i32_0 = arith.constant 0 : i32
    return %arg0, %arg1, %c0_i32 : i32, i32, i32
  }
  func.func @transform_3(%arg0: i32, %arg1: i32, %arg2: i32, %arg3: i32) -> (i32, i32, i32) {
    %c0_i32 = arith.constant 0 : i32
    return %arg0, %arg3, %arg2 : i32, i32, i32
  }
  func.func @transform_4(%arg0: i32, %arg1: i32, %arg2: i32, %arg3: i32) -> (i32, i32, i32) {
    %c0_i32 = arith.constant 0 : i32
    return %arg0, %arg1, %arg2 : i32, i32, i32
  }
}

</mosaic_0001>

<llo_original>
// kernel: tpu_custom_call.1
$region0: #{tpu_custom_call.1}
  #allocation0 [shape = 'u32[]', space=smem, size = 0x4, offset = 0x4, fixed_abs, tag = 'smem constant byte address 0x4 - core index']
  #allocation1 [shape = 'u32[144,128]{1,0:T(1,128)}', space=vmem, size = 0x12000, scoped, tag = 'internal scratch']
  #allocation2 [shape = 'f32[1,8,128]{2,1,0:T(8,128)}', space=vmem, size = 0x1000, scoped, tag = 'scratch operand']
  #allocation3 [shape = 'f32[8,128]{1,0:T(8,128)}', space=vmem, size = 0x1000, scoped, tag = 'scratch operand']
  %s0 = inlined_call_operand.hbm [shape: f32[128,128], index: 0, kind: input, shape index: {}]
  %s1 = inlined_call_operand.vmem [shape: f32[1,128], index: 1, kind: input, shape index: {}]
  %s2 = inlined_call_operand.hbm [shape: f32[2,8,128], index: 2, kind: input, shape index: {}]
  %s3 = inlined_call_operand.hbm [shape: f32[2,128,128], index: 3, kind: input, shape index: {}]
  %s4 = inlined_call_operand.hbm [shape: f32[2,8,128], index: 4, kind: output, shape index: {}]
  %s5 = sld [smem:[#allocation0]]
  $region73: #{tpu_custom_call.1} parent=0
    _
  %s7 = ssub.s32 1, %s5
  %s8 = scalar_select 0, %s7, %s5
  $region1: #{tpu_custom_call.1} parent=0
    #allocation4 [shape = 'u8[65536]{0}', space=vmem, size = 0x10000, scoped, tag = 'input window, operand 0, single buffered']
    #allocation5 [shape = 's32[2]{0}', space=sflag, size = 0x8, scoped, tag = 'scoped memory for tpu_custom_call.1']
    #allocation6 [shape = 's32[2]{0}', space=sflag, size = 0x8, scoped, tag = 'scoped memory for tpu_custom_call.1']
    #allocation7 [shape = 'u8[8192]{0}', space=vmem, size = 0x2000, scoped, tag = 'input window, operand 2']
    #allocation8 [shape = 's32[2]{0}', space=sflag, size = 0x8, scoped, tag = 'scoped memory for tpu_custom_call.1']
    #allocation9 [shape = 'u8[131072]{0}', space=vmem, size = 0x20000, scoped, tag = 'input window, operand 3']
    #allocation10 [shape = 'u8[8192]{0}', space=vmem, size = 0x2000, scoped, tag = 'output window, operand 0']
    %9 = vsyncpa [#allocation5], 0
    %10 = vsyncpa [#allocation8], 0
    %s11 = scalar_lea.sflag [#allocation8], 1
    %12 = vsyncpa %s11, 0
    %13 = vsyncpa [#allocation6], 0
    %s14 = scalar_lea.sflag [#allocation6], 1
    %15 = vsyncpa %s14, 0
    loop: start=0, step=1, limit=4
    $region2: #{tpu_custom_call.1} parent=1 // loop_pre_header
      _
    $region3: #{tpu_custom_call.1} parent=1 // loop_header
      %s17 = sphi 0, %s21
      %p18 = scmp.ge.s32.totalorder %s17, 4
      %s24 = sphi 0, %s50
      %s25 = sphi 0, %s46
      %s26 = sphi 0, %s42
      %s27 = sphi 0, %s38
      %s28 = sphi 0, %s24
      %s29 = sphi 0, %s25
      %s30 = sphi 0, %s26
      %s31 = sphi 0, %s27
      %s32 = sphi 0, %s28
      %s33 = sphi 0, %s29
      %s34 = sphi 0, %s30
      %s35 = sphi 0, %s31
      %s53 = sphi 0, %s55
      %s56 = sphi 0, %s53
      %s57 = sphi 0, %s56
      %s73 = sphi 0, %s57
      %s79 = sphi 0, %s81
      %s82 = sphi 0, %s79
      %s83 = sphi 0, %s82
      %s99 = sphi 0, %s83
      %s107 = sphi 0, %s109
      %s110 = sphi 0, %s107
      %s111 = sphi 0, %s110
      %s127 = sphi 0, %s111
      %s137 = sphi 0, %s139
      %s140 = sphi 0, %s137
      %s141 = sphi 0, %s140
      %s157 = sphi 0, %s141
      %s167 = sphi 0, %s169
      %s170 = sphi 0, %s167
      %s171 = sphi 0, %s170
      %s187 = sphi 0, %s171
    $region4: #{tpu_custom_call.1} parent=1 // loop_header_branch
      %20 = sbr.rel (%p18) target = $region8
    $region5: #{tpu_custom_call.1} parent=1 // loop_body
      %s22 = ssub.s32 %s17, 1
      %s23 = ssub.s32 %s17, 2
      %s36 = sadd.s32 1, %s27
      %p37 = scmp.ge.s32.totalorder %s36, 1
      %s38 = scalar_select %p37, 0, %s36
      %s39 = sadd.s32 1, %s26
      %s40 = scalar_select %p37, %s39, %s26
      %p41 = scmp.ge.s32.totalorder %s40, 1
      %s42 = scalar_select %p41, 0, %s40
      %s43 = sadd.s32 1, %s25
      %s44 = scalar_select %p41, %s43, %s25
      %p45 = scmp.ge.s32.totalorder %s44, 1
      %s46 = scalar_select %p45, 0, %s44
      %s47 = sadd.s32 1, %s24
      %s48 = scalar_select %p45, %s47, %s24
      %p49 = scmp.ge.s32.totalorder %s48, 2
      %s50 = scalar_select %p49, 0, %s48
      %s51 = ssub.s32 %s27, %s38
      %p52 = scmp.eq.s32.totalorder %s51, 0
      %s54 = sadd.s32 %s53, 1
      %s55 = scalar_select %p52, %s53, %s54
      %p58 = pneg %p52
      %p59 = scmp.eq.s32.totalorder %s17, 1
      %p60 = por %p58, %p59
      %p61 = scmp.ne.s32.totalorder %s53, %s56
      %p62 = scmp.eq.s32.totalorder %s17, 0
      %p63 = por %p61, %p62
      %p64 = scmp.ne.s32.totalorder %s53, %s56
      %p65 = scmp.eq.s32.totalorder %s22, 1
      %p66 = por %p64, %p65
      %p67 = scmp.ne.s32.totalorder %s56, %s57
      %p68 = scmp.eq.s32.totalorder %s22, 0
      %p69 = por %p67, %p68
      %p70 = scmp.ne.s32.totalorder %s56, %s57
      %p71 = scmp.eq.s32.totalorder %s23, 1
      %p72 = por %p70, %p71
      %p74 = scmp.ne.s32.totalorder %s57, %s73
      %p75 = scmp.eq.s32.totalorder %s23, 0
      %p76 = por %p74, %p75
      %s77 = ssub.s32 %s27, %s38
      %p78 = scmp.eq.s32.totalorder %s77, 0
      %s80 = sadd.s32 %s79, 1
      %s81 = scalar_select %p78, %s79, %s80
      %p84 = pneg %p78
      %p85 = scmp.eq.s32.totalorder %s17, 1
      %p86 = por %p84, %p85
      %p87 = scmp.ne.s32.totalorder %s79, %s82
      %p88 = scmp.eq.s32.totalorder %s17, 0
      %p89 = por %p87, %p88
      %p90 = scmp.ne.s32.totalorder %s79, %s82
      %p91 = scmp.eq.s32.totalorder %s22, 1
      %p92 = por %p90, %p91
      %p93 = scmp.ne.s32.totalorder %s82, %s83
      %p94 = scmp.eq.s32.totalorder %s22, 0
      %p95 = por %p93, %p94
      %p96 = scmp.ne.s32.totalorder %s82, %s83
      %p97 = scmp.eq.s32.totalorder %s23, 1
      %p98 = por %p96, %p97
      %p100 = scmp.ne.s32.totalorder %s83, %s99
      %p101 = scmp.eq.s32.totalorder %s23, 0
      %p102 = por %p100, %p101
      %s103 = ssub.s32 %s24, %s50
      %s104 = ssub.s32 %s25, %s46
      %s105 = sor.u32 %s103, %s104
      %p106 = scmp.eq.s32.totalorder %s105, 0
      %s108 = sadd.s32 %s107, 1
      %s109 = scalar_select %p106, %s107, %s108
      %p112 = pneg %p106
      %p113 = scmp.eq.s32.totalorder %s17, 1
      %p114 = por %p112, %p113
      %p115 = scmp.ne.s32.totalorder %s107, %s110
      %p116 = scmp.eq.s32.totalorder %s17, 0
      %p117 = por %p115, %p116
      %p118 = scmp.ne.s32.totalorder %s107, %s110
      %p119 = scmp.eq.s32.totalorder %s22, 1
      %p120 = por %p118, %p119
      %p121 = scmp.ne.s32.totalorder %s110, %s111
      %p122 = scmp.eq.s32.totalorder %s22, 0
      %p123 = por %p121, %p122
      %p124 = scmp.ne.s32.totalorder %s110, %s111
      %p125 = scmp.eq.s32.totalorder %s23, 1
      %p126 = por %p124, %p125
      %p128 = scmp.ne.s32.totalorder %s111, %s127
      %p129 = scmp.eq.s32.totalorder %s23, 0
      %p130 = por %p128, %p129
      %s131 = ssub.s32 %s24, %s50
      %s132 = ssub.s32 %s27, %s38
      %s133 = sor.u32 %s131, %s132
      %s134 = ssub.s32 %s26, %s42
      %s135 = sor.u32 %s133, %s134
      %p136 = scmp.eq.s32.totalorder %s135, 0
      %s138 = sadd.s32 %s137, 1
      %s139 = scalar_select %p136, %s137, %s138
      %p142 = pneg %p136
      %p143 = scmp.eq.s32.totalorder %s17, 1
      %p144 = por %p142, %p143
      %p145 = scmp.ne.s32.totalorder %s137, %s140
      %p146 = scmp.eq.s32.totalorder %s17, 0
      %p147 = por %p145, %p146
      %p148 = scmp.ne.s32.totalorder %s137, %s140
      %p149 = scmp.eq.s32.totalorder %s22, 1
      %p150 = por %p148, %p149
      %p151 = scmp.ne.s32.totalorder %s140, %s141
      %p152 = scmp.eq.s32.totalorder %s22, 0
      %p153 = por %p151, %p152
      %p154 = scmp.ne.s32.totalorder %s140, %s141
      %p155 = scmp.eq.s32.totalorder %s23, 1
      %p156 = por %p154, %p155
      %p158 = scmp.ne.s32.totalorder %s141, %s157
      %p159 = scmp.eq.s32.totalorder %s23, 0
      %p160 = por %p158, %p159
      %s161 = ssub.s32 %s24, %s50
      %s162 = ssub.s32 %s25, %s46
      %s163 = sor.u32 %s161, %s162
      %s164 = ssub.s32 %s26, %s42
      %s165 = sor.u32 %s163, %s164
      %p166 = scmp.eq.s32.totalorder %s165, 0
      %s168 = sadd.s32 %s167, 1
      %s169 = scalar_select %p166, %s167, %s168
      %p172 = pneg %p166
      %p173 = scmp.eq.s32.totalorder %s17, 1
      %p174 = por %p172, %p173
      %p175 = scmp.ne.s32.totalorder %s167, %s170
      %p176 = scmp.eq.s32.totalorder %s17, 0
      %p177 = por %p175, %p176
      %p178 = scmp.ne.s32.totalorder %s167, %s170
      %p179 = scmp.eq.s32.totalorder %s22, 1
      %p180 = por %p178, %p179
      %p181 = scmp.ne.s32.totalorder %s170, %s171
      %p182 = scmp.eq.s32.totalorder %s22, 0
      %p183 = por %p181, %p182
      %p184 = scmp.ne.s32.totalorder %s170, %s171
      %p185 = scmp.eq.s32.totalorder %s23, 1
      %p186 = por %p184, %p185
      %p188 = scmp.ne.s32.totalorder %s171, %s187
      %p189 = scmp.eq.s32.totalorder %s23, 0
      %p190 = por %p188, %p189
      %p191 = scmp.le.s32.totalorder 1, %s17
      %p192 = scmp.lt.s32.totalorder %s17, 3
      %p193 = pnand %p191, %p192
      %p194 = pneg %p193
      // Predicated region
      $region9: #{tpu_custom_call.1} parent=5 // pred_check
        _
      $region10: #{tpu_custom_call.1} parent=5 // pred_check_branch
        %196 = sbr.rel (%p193) target = $region12
      $region11: #{tpu_custom_call.1} parent=5 // pred_region
        %s197 = ssub.s32 %s17, 1
        // Predicated region
        $region13: #{tpu_custom_call.1} parent=11 // pred_check
          %p198 = pneg %p69
        $region14: #{tpu_custom_call.1} parent=11 // pred_check_branch
          %200 = sbr.rel (%p198) target = $region16
        $region15: #{tpu_custom_call.1} parent=11 // pred_region
          %s202 = ssub.s32 2048, 2048
          %203 = vsyncadd [#allocation5], %s202
          %s204 = smul.addr %s31, 128
          %s205 = scalar_lea.hbm %s0, %s204
          %s206 = sshll.u32 [#allocation4], 4
          %s207 = int_to_ptr.vmem [resolvable:$true] %s206
          %212 = dma.hbm_to_vmem [thread:$0]  %s205, 2048, %s207, [#allocation5], 128, 128, 8
        $region16: #{tpu_custom_call.1} parent=11 // pred_fallthru
          _
        // Predicated region
        $region17: #{tpu_custom_call.1} parent=11 // pred_check
          %p213 = pneg %p95
        $region18: #{tpu_custom_call.1} parent=11 // pred_check_branch
          %215 = sbr.rel (%p213) target = $region20
        $region19: #{tpu_custom_call.1} parent=11 // pred_region
          %p216 = scmp.lt.s32.totalorder %s31, 0
          %s217 = scalar_select %p216, %s31, 0
          %s218 = scalar_lea.vmem %s1, %s217
        $region20: #{tpu_custom_call.1} parent=11 // pred_fallthru
          _
      $region12: #{tpu_custom_call.1} parent=5 // pred_fallthru
        _
      %p219 = scmp.lt.s32.totalorder %s17, 2
      // Predicated region
      $region21: #{tpu_custom_call.1} parent=5 // pred_check
        %p220 = pneg %p219
      $region22: #{tpu_custom_call.1} parent=5 // pred_check_branch
        %222 = sbr.rel (%p220) target = $region24
      $region23: #{tpu_custom_call.1} parent=5 // pred_region
        // Predicated region
        $region25: #{tpu_custom_call.1} parent=23 // pred_check
          %p223 = pneg %p117
        $region26: #{tpu_custom_call.1} parent=23 // pred_check_branch
          %225 = sbr.rel (%p223) target = $region28
        $region27: #{tpu_custom_call.1} parent=23 // pred_region
          %s226 = sand.u32 %s17, 1
          %s227 = scalar_lea.sflag [#allocation8], %s226
          %s228 = sand.u32 %s107, 1
          %s229 = smul.addr %s228, 8
          %s230 = scalar_lea.vmem [#allocation7], %s229
          %s232 = ssub.s32 128, 128
          %233 = vsyncadd %s227, %s232
          %s234 = sadd.s32 %s25, %s24
          %s235 = smul.addr %s234, 128
          %s236 = scalar_lea.hbm %s2, %s235
          %s238 = sshll.u32 %s230, 4
          %s239 = int_to_ptr.vmem [resolvable:$true] %s238
          %241 = dma.hbm_to_vmem [thread:$0]  %s236, 128, %s239, %s227
        $region28: #{tpu_custom_call.1} parent=23 // pred_fallthru
          _
        // Predicated region
        $region29: #{tpu_custom_call.1} parent=23 // pred_check
          %p242 = pneg %p147
        $region30: #{tpu_custom_call.1} parent=23 // pred_check_branch
          %244 = sbr.rel (%p242) target = $region32
        $region31: #{tpu_custom_call.1} parent=23 // pred_region
          %s245 = sand.u32 %s17, 1
          %s246 = scalar_lea.sflag [#allocation8], %s245
          %s247 = sand.u32 %s137, 1
          %s248 = smul.addr %s247, 128
          %s249 = scalar_lea.vmem [#allocation9], %s248
          %s250 = smul.u32 16, %s27
          %s252 = ssub.s32 2048, 2048
          %253 = vsyncadd %s246, %s252
          %s254 = sadd.s32 %s26, %s250
          %s255 = smul.addr %s24, 16
          %s256 = sadd.s32 %s254, %s255
          %s257 = smul.addr %s256, 128
          %s258 = scalar_lea.hbm %s3, %s257
          %s259 = sshll.u32 %s249, 4
          %s260 = int_to_ptr.vmem [resolvable:$true] %s259
          %265 = dma.hbm_to_vmem [thread:$0]  %s258, 2048, %s260, %s246, 128, 128, 8
        $region32: #{tpu_custom_call.1} parent=23 // pred_fallthru
          _
      $region24: #{tpu_custom_call.1} parent=5 // pred_fallthru
        _
      %p266 = scmp.le.s32.totalorder 1, %s17
      %p267 = scmp.lt.s32.totalorder %s17, 3
      %p268 = pnand %p266, %p267
      %p269 = pneg %p268
      // Predicated region
      $region33: #{tpu_custom_call.1} parent=5 // pred_check
        _
      $region34: #{tpu_custom_call.1} parent=5 // pred_check_branch
        %271 = sbr.rel (%p268) target = $region36
      $region35: #{tpu_custom_call.1} parent=5 // pred_region
        %s272 = ssub.s32 %s17, 1
        // Predicated region
        $region37: #{tpu_custom_call.1} parent=35 // pred_check
          %p273 = pneg %p69
        $region38: #{tpu_custom_call.1} parent=35 // pred_check_branch
          %275 = sbr.rel (%p273) target = $region40
        $region39: #{tpu_custom_call.1} parent=35 // pred_region
          %276 = dma.done [#allocation5], 2048
        $region40: #{tpu_custom_call.1} parent=35 // pred_fallthru
          _
        %s277 = sand.u32 %s22, 1
        %s278 = scalar_lea.sflag [#allocation8], %s277
        %s279 = sand.u32 %s110, 1
        %s280 = smul.addr %s279, 8
        %s281 = scalar_lea.vmem [#allocation7], %s280
        // Predicated region
        $region41: #{tpu_custom_call.1} parent=35 // pred_check
          %p282 = pneg %p123
        $region42: #{tpu_custom_call.1} parent=35 // pred_check_branch
          %284 = sbr.rel (%p282) target = $region44
        $region43: #{tpu_custom_call.1} parent=35 // pred_region
          %285 = dma.done %s278, 128
        $region44: #{tpu_custom_call.1} parent=35 // pred_fallthru
          _
        %s286 = sand.u32 %s22, 1
        %s287 = scalar_lea.sflag [#allocation8], %s286
        %s288 = sand.u32 %s140, 1
        %s289 = smul.addr %s288, 128
        %s290 = scalar_lea.vmem [#allocation9], %s289
        // Predicated region
        $region45: #{tpu_custom_call.1} parent=35 // pred_check
          %p291 = pneg %p153
        $region46: #{tpu_custom_call.1} parent=35 // pred_check_branch
          %293 = sbr.rel (%p291) target = $region48
        $region47: #{tpu_custom_call.1} parent=35 // pred_region
          %294 = dma.done %s287, 2048
        $region48: #{tpu_custom_call.1} parent=35 // pred_fallthru
          _
        %p295 = pneg %p69
        %p296 = pneg %p66
        %p297 = scmp.lt.s32.totalorder %s31, 0
        %s298 = scalar_select %p297, %s31, 0
        %s299 = scalar_lea.vmem %s1, %s298
        %p300 = pneg %p95
        %p301 = pneg %p92
        %s302 = sand.u32 %s22, 1
        %s303 = scalar_lea.sflag [#allocation8], %s302
        %s304 = sand.u32 %s110, 1
        %s305 = smul.addr %s304, 8
        %s306 = scalar_lea.vmem [#allocation7], %s305
        %p307 = pneg %p123
        %p308 = pneg %p120
        %s309 = sand.u32 %s22, 1
        %s310 = scalar_lea.sflag [#allocation8], %s309
        %s311 = sand.u32 %s140, 1
        %s312 = smul.addr %s311, 128
        %s313 = scalar_lea.vmem [#allocation9], %s312
        %p314 = pneg %p153
        %p315 = pneg %p150
        %p316 = pneg %p183
        %p317 = pneg %p180
        %s318 = sand.u32 %s170, 1
        %s319 = scalar_lea.sflag [#allocation6], %s318
        %s320 = sand.u32 %s170, 1
        %s321 = smul.addr %s320, 8
        %s322 = scalar_lea.vmem [#allocation10], %s321
        %p323 = scmp.lt.s32.totalorder %s31, 0
        %s324 = scalar_select %p323, %s31, 0
        %s325 = scalar_lea.vmem %s1, %s324
        %s326 = smul.u32 16, %s31
        %p327 = scmp.eq.s32.totalorder %s30, 0
        // Predicated region
        $region49: #{tpu_custom_call.1} parent=35 // pred_check
          %p328 = pneg %p327
        $region50: #{tpu_custom_call.1} parent=35 // pred_check_branch
          %330 = sbr.rel (%p328) target = $region52
        $region51: #{tpu_custom_call.1} parent=35 // pred_region
          %v331 = vld [vmem:[%s281] sm:$0xff]
          %v332 = vld [vmem:[#allocation4] sm:$0xff]
          %v333 = vld [vmem:[#allocation4 + $0x8] sm:$0xff]
          %v334 = vld [vmem:[#allocation4 + $0x10] sm:$0xff]
          %v335 = vld [vmem:[#allocation4 + $0x18] sm:$0xff]
          %v336 = vld [vmem:[#allocation4 + $0x20] sm:$0xff]
          %v337 = vld [vmem:[#allocation4 + $0x28] sm:$0xff]
          %v338 = vld [vmem:[#allocation4 + $0x30] sm:$0xff]
          %v339 = vld [vmem:[#allocation4 + $0x38] sm:$0xff]
          %v340 = vld [vmem:[#allocation4 + $0x40] sm:$0xff]
          %v341 = vld [vmem:[#allocation4 + $0x48] sm:$0xff]
          %v342 = vld [vmem:[#allocation4 + $0x50] sm:$0xff]
          %v343 = vld [vmem:[#allocation4 + $0x58] sm:$0xff]
          %v344 = vld [vmem:[#allocation4 + $0x60] sm:$0xff]
          %v345 = vld [vmem:[#allocation4 + $0x68] sm:$0xff]
          %v346 = vld [vmem:[#allocation4 + $0x70] sm:$0xff]
          %v347 = vld [vmem:[#allocation4 + $0x78] sm:$0xff]
          %v348 = vld [vmem:[%s325] sm:$0x1]
          %v350 = vlaneseq
          %v351 = vshrl.u32 %v350, 7
          %v352 = vsub.s32 0, %v351
          %v353 = vrot.slane %v348, %v352
          %355 = vmatprep.subr.mxu0 0.0
          %356 = vmatpush1.msra.mxu0 %v332
          %357 = vmatprep.subr.mxu0 0.0
          %358 = vmatpush1.msra.mxu0 %v333
          %359 = vmatprep.subr.mxu0 0.0
          %360 = vmatpush1.msra.mxu0 %v334
          %361 = vmatprep.subr.mxu0 0.0
          %362 = vmatpush1.msra.mxu0 %v335
          %363 = vmatprep.subr.mxu0 0.0
          %364 = vmatpush1.msra.mxu0 %v336
          %365 = vmatprep.subr.mxu0 0.0
          %366 = vmatpush1.msra.mxu0 %v337
          %367 = vmatprep.subr.mxu0 0.0
          %368 = vmatpush1.msra.mxu0 %v338
          %369 = vmatprep.subr.mxu0 0.0
          %370 = vmatpush1.msra.mxu0 %v339
          %371 = vmatprep.subr.mxu0 0.0
          %372 = vmatpush1.msra.mxu0 %v340
          %373 = vmatprep.subr.mxu0 0.0
          %374 = vmatpush1.msra.mxu0 %v341
          %375 = vmatprep.subr.mxu0 0.0
          %376 = vmatpush1.msra.mxu0 %v342
          %377 = vmatprep.subr.mxu0 0.0
          %378 = vmatpush1.msra.mxu0 %v343
          %379 = vmatprep.subr.mxu0 0.0
          %380 = vmatpush1.msra.mxu0 %v344
          %381 = vmatprep.subr.mxu0 0.0
          %382 = vmatpush1.msra.mxu0 %v345
          %383 = vmatprep.subr.mxu0 0.0
          %384 = vmatpush1.msra.mxu0 %v346
          %385 = vmatprep.subr.mxu0 0.0
          %386 = vmatpush1.msra.mxu0 %v347
          %387 = vmatprep.subr.mxu0 0.0
          %388 = vmatpush1.msra.mxu0 0.0
          %389 = vmatprep.subr.mxu0 0.0
          %390 = vmatpush1.msra.mxu0 0.0
          %391 = vmatprep.subr.mxu0 0.0
          %392 = vmatpush1.msra.mxu0 0.0
          %393 = vmatprep.subr.mxu0 0.0
          %394 = vmatpush1.msra.mxu0 0.0
          %395 = vmatprep.subr.mxu0 0.0
          %396 = vmatpush1.msra.mxu0 0.0
          %397 = vmatprep.subr.mxu0 0.0
          %398 = vmatpush1.msra.mxu0 0.0
          %399 = vmatprep.subr.mxu0 0.0
          %400 = vmatpush1.msra.mxu0 0.0
          %401 = vmatprep.subr.mxu0 0.0
          %402 = vmatpush1.msra.mxu0 0.0
          %403 = vmatprep.subr.mxu0 0.0
          %404 = vmatpush1.msra.mxu0 0.0
          %405 = vmatprep.subr.mxu0 0.0
          %406 = vmatpush1.msra.mxu0 0.0
          %407 = vmatprep.subr.mxu0 0.0
          %408 = vmatpush1.msra.mxu0 0.0
          %409 = vmatprep.subr.mxu0 0.0
          %410 = vmatpush1.msra.mxu0 0.0
          %411 = vmatprep.subr.mxu0 0.0
          %412 = vmatpush1.msra.mxu0 0.0
          %413 = vmatprep.subr.mxu0 0.0
          %414 = vmatpush1.msra.mxu0 0.0
          %415 = vmatprep.subr.mxu0 0.0
          %416 = vmatpush1.msra.mxu0 0.0
          %417 = vmatprep.subr.mxu0 0.0
          %418 = vmatpush1.msra.mxu0 0.0
          %419 = vmatprep.mubr.f32.mxu0 0.0
          %420 = vmatmul.mubr.f32.gmra.mrb[0].mxu0 %v331
          %v421 = vpop.f32.mrb[0].mxu0
          %v422 = vadd.f32 %v353, %v421
          %v423 = vpop.f32.mrb[0].mxu0
          %424 = vdwg.mxu0
          %s425 = smul.u32 %s31, 8
          %s426 = scalar_lea.vmem [#allocation2], %s425
          %427 = vst [vmem:[%s426] sm:$0xff] %v422
        $region52: #{tpu_custom_call.1} parent=35 // pred_fallthru
          _
        %p428 = scmp.eq.s32.totalorder %s31, 0
        // Predicated region
        $region53: #{tpu_custom_call.1} parent=35 // pred_check
          %p429 = pneg %p428
        $region54: #{tpu_custom_call.1} parent=35 // pred_check_branch
          %431 = sbr.rel (%p429) target = $region56
        $region55: #{tpu_custom_call.1} parent=35 // pred_region
          %432 = vst [vmem:[#allocation3] sm:$0xff] 0.0
        $region56: #{tpu_custom_call.1} parent=35 // pred_fallthru
          _
        %v433 = vld [vmem:[#allocation3] sm:$0xff]
        %s434 = smul.u32 %s31, 8
        %s435 = scalar_lea.vmem [#allocation2], %s434
        %v436 = vld [vmem:[%s435] sm:$0xff]
        %v437 = vld [vmem:[%s290] sm:$0xff]
        %v438 = vld [vmem:[%s290 + $0x8] sm:$0xff]
        %v439 = vld [vmem:[%s290 + $0x10] sm:$0xff]
        %v440 = vld [vmem:[%s290 + $0x18] sm:$0xff]
        %v441 = vld [vmem:[%s290 + $0x20] sm:$0xff]
        %v442 = vld [vmem:[%s290 + $0x28] sm:$0xff]
        %v443 = vld [vmem:[%s290 + $0x30] sm:$0xff]
        %v444 = vld [vmem:[%s290 + $0x38] sm:$0xff]
        %v445 = vld [vmem:[%s290 + $0x40] sm:$0xff]
        %v446 = vld [vmem:[%s290 + $0x48] sm:$0xff]
        %v447 = vld [vmem:[%s290 + $0x50] sm:$0xff]
        %v448 = vld [vmem:[%s290 + $0x58] sm:$0xff]
        %v449 = vld [vmem:[%s290 + $0x60] sm:$0xff]
        %v450 = vld [vmem:[%s290 + $0x68] sm:$0xff]
        %v451 = vld [vmem:[%s290 + $0x70] sm:$0xff]
        %v452 = vld [vmem:[%s290 + $0x78] sm:$0xff]
        %453 = vmatprep.subr.mxu0 0.0
        %454 = vmatpush1.msra.mxu0 %v437
        %455 = vmatprep.subr.mxu0 0.0
        %456 = vmatpush1.msra.mxu0 %v438
        %457 = vmatprep.subr.mxu0 0.0
        %458 = vmatpush1.msra.mxu0 %v439
        %459 = vmatprep.subr.mxu0 0.0
        %460 = vmatpush1.msra.mxu0 %v440
        %461 = vmatprep.subr.mxu0 0.0
        %462 = vmatpush1.msra.mxu0 %v441
        %463 = vmatprep.subr.mxu0 0.0
        %464 = vmatpush1.msra.mxu0 %v442
        %465 = vmatprep.subr.mxu0 0.0
        %466 = vmatpush1.msra.mxu0 %v443
        %467 = vmatprep.subr.mxu0 0.0
        %468 = vmatpush1.msra.mxu0 %v444
        %469 = vmatprep.subr.mxu0 0.0
        %470 = vmatpush1.msra.mxu0 %v445
        %471 = vmatprep.subr.mxu0 0.0
        %472 = vmatpush1.msra.mxu0 %v446
        %473 = vmatprep.subr.mxu0 0.0
        %474 = vmatpush1.msra.mxu0 %v447
        %475 = vmatprep.subr.mxu0 0.0
        %476 = vmatpush1.msra.mxu0 %v448
        %477 = vmatprep.subr.mxu0 0.0
        %478 = vmatpush1.msra.mxu0 %v449
        %479 = vmatprep.subr.mxu0 0.0
        %480 = vmatpush1.msra.mxu0 %v450
        %481 = vmatprep.subr.mxu0 0.0
        %482 = vmatpush1.msra.mxu0 %v451
        %483 = vmatprep.subr.mxu0 0.0
        %484 = vmatpush1.msra.mxu0 %v452
        %485 = vmatprep.subr.mxu0 0.0
        %486 = vmatpush1.msra.mxu0 0.0
        %487 = vmatprep.subr.mxu0 0.0
        %488 = vmatpush1.msra.mxu0 0.0
        %489 = vmatprep.subr.mxu0 0.0
        %490 = vmatpush1.msra.mxu0 0.0
        %491 = vmatprep.subr.mxu0 0.0
        %492 = vmatpush1.msra.mxu0 0.0
        %493 = vmatprep.subr.mxu0 0.0
        %494 = vmatpush1.msra.mxu0 0.0
        %495 = vmatprep.subr.mxu0 0.0
        %496 = vmatpush1.msra.mxu0 0.0
        %497 = vmatprep.subr.mxu0 0.0
        %498 = vmatpush1.msra.mxu0 0.0
        %499 = vmatprep.subr.mxu0 0.0
        %500 = vmatpush1.msra.mxu0 0.0
        %501 = vmatprep.subr.mxu0 0.0
        %502 = vmatpush1.msra.mxu0 0.0
        %503 = vmatprep.subr.mxu0 0.0
        %504 = vmatpush1.msra.mxu0 0.0
        %505 = vmatprep.subr.mxu0 0.0
        %506 = vmatpush1.msra.mxu0 0.0
        %507 = vmatprep.subr.mxu0 0.0
        %508 = vmatpush1.msra.mxu0 0.0
        %509 = vmatprep.subr.mxu0 0.0
        %510 = vmatpush1.msra.mxu0 0.0
        %511 = vmatprep.subr.mxu0 0.0
        %512 = vmatpush1.msra.mxu0 0.0
        %513 = vmatprep.subr.mxu0 0.0
        %514 = vmatpush1.msra.mxu0 0.0
        %515 = vmatprep.subr.mxu0 0.0
        %516 = vmatpush1.msra.mxu0 0.0
        %517 = vmatprep.mubr.f32.mxu0 0.0
        %518 = vmatmul.mubr.f32.gmra.mrb[0].mxu0 %v436
        %v519 = vpop.f32.mrb[0].mxu0
        %v520 = vadd.f32 0.0, %v519
        %v521 = vpop.f32.mrb[0].mxu0
        %522 = vdwg.mxu0
        %v523 = vadd.f32 %v433, %v520
        %524 = vst [vmem:[#allocation3] sm:$0xff] %v523
        // Predicated region
        $region57: #{tpu_custom_call.1} parent=35 // pred_check
          %p525 = pneg %p428
        $region58: #{tpu_custom_call.1} parent=35 // pred_check_branch
          %527 = sbr.rel (%p525) target = $region60
        $region59: #{tpu_custom_call.1} parent=35 // pred_region
          %v528 = vld [vmem:[#allocation3] sm:$0xff]
          %529 = vst [vmem:[%s322] sm:$0xff] %v528
        $region60: #{tpu_custom_call.1} parent=35 // pred_fallthru
          _
        %s530 = sand.u32 %s170, 1
        %s531 = scalar_lea.sflag [#allocation6], %s530
        %s532 = sand.u32 %s170, 1
        %s533 = smul.addr %s532, 8
        %s534 = scalar_lea.vmem [#allocation10], %s533
        // Predicated region
        $region61: #{tpu_custom_call.1} parent=35 // pred_check
          %p535 = pneg %p180
        $region62: #{tpu_custom_call.1} parent=35 // pred_check_branch
          %537 = sbr.rel (%p535) target = $region64
        $region63: #{tpu_custom_call.1} parent=35 // pred_region
          %s539 = ssub.s32 128, 128
          %540 = vsyncadd %s531, %s539
          %s541 = sadd.s32 %s30, %s29
          %s542 = sadd.s32 %s541, %s28
          %s543 = smul.addr %s542, 128
          %s544 = scalar_lea.hbm %s4, %s543
          %s546 = sshll.u32 %s534, 4
          %s547 = int_to_ptr.vmem [resolvable:$true] %s546
          %549 = dma.vmem_to_hbm [thread:$0]  %s547, 128, %s544, %s531
        $region64: #{tpu_custom_call.1} parent=35 // pred_fallthru
          _
      $region36: #{tpu_custom_call.1} parent=5 // pred_fallthru
        _
      %p550 = scmp.le.s32.totalorder 2, %s17
      // Predicated region
      $region65: #{tpu_custom_call.1} parent=5 // pred_check
        %p551 = pneg %p550
      $region66: #{tpu_custom_call.1} parent=5 // pred_check_branch
        %553 = sbr.rel (%p551) target = $region68
      $region67: #{tpu_custom_call.1} parent=5 // pred_region
        %s554 = ssub.s32 %s17, 2
        // Predicated region
        $region69: #{tpu_custom_call.1} parent=67 // pred_check
          %p555 = pneg %p186
        $region70: #{tpu_custom_call.1} parent=67 // pred_check_branch
          %557 = sbr.rel (%p555) target = $region72
        $region71: #{tpu_custom_call.1} parent=67 // pred_region
          %s558 = sand.u32 %s171, 1
          %s559 = scalar_lea.sflag [#allocation6], %s558
          %s560 = sand.u32 %s171, 1
          %s561 = smul.addr %s560, 8
          %s562 = scalar_lea.vmem [#allocation10], %s561
          %563 = dma.done %s559, 128
        $region72: #{tpu_custom_call.1} parent=67 // pred_fallthru
          _
      $region68: #{tpu_custom_call.1} parent=5 // pred_fallthru
        _
    $region6: #{tpu_custom_call.1} parent=1 // loop_footer
      %s21 = sadd.s32 1, %s17
    $region7: #{tpu_custom_call.1} parent=1 // loop_footer_branch
      %16 = sbr.rel target = $region3
    $region8: #{tpu_custom_call.1} parent=1 // loop_exit
      _
    %564 = vsyncpa [#allocation5], 1
    %s565 = scalar_lea.sflag [#allocation5], 1
    %566 = vsyncpa %s565, 1
    %567 = vsyncpa [#allocation8], 1
    %s568 = scalar_lea.sflag [#allocation8], 1
    %569 = vsyncpa %s568, 1
    %570 = vsyncpa [#allocation6], 1
    %s571 = scalar_lea.sflag [#allocation6], 1
    %572 = vsyncpa %s571, 1

</llo_original>
